<compile_context>
chip_gen: v7x
topology: tpu7x:2x2x1
jax: 0.10.0
libtpu: 0.0.40
codegen_flags: <defaults>
</compile_context>

<pallas_src>
import functools

import jax
import jax.numpy as jnp
import numpy as np
from jax.experimental import pallas as pl
from jax.experimental.pallas import tpu as pltpu


# --------------------------------------------------------------------------- #
# Fused kernel: gather + conv/relu/maxpool (all branches) + fc + softmax
# --------------------------------------------------------------------------- #
def _fused_cnn_kernel(ids_ref, emb_ref, w_ref, bias_ref, perm_ref, fcw_ref,
                      fcb_ref, probs_ref, feats_ref, *, ksizes, L, F):
    """Whole forward pass for the full (tiny) batch in one invocation.

    ids_ref:   (B*L, 1) int32 token ids
    emb_ref:   (V, D)   frozen embedding table
    w_ref:     (D, sum(k)*F) all conv taps of all kernel sizes, tap-major
    bias_ref:  (1, nk*F) conv biases, branch-major
    perm_ref:  (nk*F, nk*F) permutation: branch-major -> torch filter-major order
    fcw_ref:   (nk*F, C) fc weight (rows in torch feature order)
    fcb_ref:   (1, C)   fc bias
    probs_ref: (B, C)   softmax probabilities
    feats_ref: (B, nk*F) extracted features (torch layout)
    """
    BL = ids_ref.shape[0]
    B = BL // L
    V, _ = emb_ref.shape

    # --- Embedding gather as a one-hot matmul (fused; no XLA gather / HBM trip).
    ids = ids_ref[...]                                              # (BL, 1) int32
    iota_v = jax.lax.broadcasted_iota(jnp.int32, (BL, V), 1)
    onehot = (iota_v == ids).astype(jnp.float32)                    # (BL, V)
    emb = jnp.dot(onehot, emb_ref[...],
                  preferred_element_type=jnp.float32)               # (BL, D)

    # --- All conv taps of all kernel sizes in ONE MXU pass.
    tapped = jnp.dot(emb, w_ref[...],
                     preferred_element_type=jnp.float32)            # (BL, sum(k)*F)
    tapped = tapped.reshape(B, L, tapped.shape[-1])                 # (B, L, sum(k)*F)

    # --- Per-branch shifted adds (VPU) + max-over-time (XLU).
    #     Bias + ReLU applied after the max (monotone => identical result).
    pooled = []
    toff = 0
    for k in ksizes:
        T = L - k + 1
        acc = tapped[:, 0:T, toff * F:(toff + 1) * F]
        for j in range(1, k):
            acc = acc + tapped[:, j:j + T, (toff + j) * F:(toff + j + 1) * F]
        pooled.append(jnp.max(acc, axis=1))                         # (B, F)
        toff += k
    feats_bm = jnp.concatenate(pooled, axis=-1)                     # (B, nk*F) branch-major
    feats_bm = jnp.maximum(feats_bm + bias_ref[...], 0.0)           # bias + ReLU post-pool

    # --- Reorder to torch's cat(dim=2).view(B, -1) layout (filter-major) via a
    #     tiny permutation matmul; keep feats in VMEM for the fc that follows.
    feats = jnp.dot(feats_bm, perm_ref[...],
                    preferred_element_type=jnp.float32)             # (B, nk*F)
    feats_ref[...] = feats

    # --- fc + softmax(dim=1), all in VMEM.
    logits = jnp.dot(feats, fcw_ref[...],
                     preferred_element_type=jnp.float32) + fcb_ref[...]
    m = jnp.max(logits, axis=-1, keepdims=True)
    e = jnp.exp(logits - m)
    denom = jnp.sum(e, axis=-1, keepdims=True)
    probs_ref[...] = e * pl.reciprocal(denom, approx=True)          # EUP slot


# --------------------------------------------------------------------------- #
# One-time weight packing (hoisted out of the forward pass; weights are frozen)
# --------------------------------------------------------------------------- #
def pack_params(conv_ws, conv_bs, fc_w, fc_b, kernel_sizes, embedding_dim,
                num_filters):
    D, F = embedding_dim, num_filters
    taps = []
    for k, w in zip(kernel_sizes, conv_ws):
        # torch Conv1d weight (F, 1, k*D) -> taps (k, D, F)
        taps.append(jnp.transpose(jnp.asarray(w).reshape(F, k, D), (1, 2, 0)))
    w_all = jnp.concatenate(taps, axis=0)                           # (sum(k), D, F)
    w_all = jnp.transpose(w_all, (1, 0, 2)).reshape(D, -1)          # (D, sum(k)*F)
    bias_bm = jnp.concatenate([jnp.asarray(b) for b in conv_bs]).reshape(1, -1)

    nk = len(kernel_sizes)
    K = nk * F
    # Permutation: branch-major (branch*F + f) -> torch order (f*nk + branch).
    perm = np.zeros((K, K), np.float32)
    for branch in range(nk):
        for f in range(F):
            perm[branch * F + f, f * nk + branch] = 1.0

    return dict(
        w_all=w_all,
        bias_bm=bias_bm,
        perm=jnp.asarray(perm),
        fc_wT=jnp.asarray(fc_w).T,                                  # (K, C)
        fc_b=jnp.asarray(fc_b).reshape(1, -1),                      # (1, C)
    )


# --------------------------------------------------------------------------- #
# Forward pass: single fused pallas_call
# --------------------------------------------------------------------------- #
@functools.partial(jax.jit, static_argnames=("kernel_sizes",))
def cnn_forward(token_ids, emb_table, params, kernel_sizes):
    B, L = token_ids.shape
    nk = len(kernel_sizes)
    F = params["bias_bm"].shape[-1] // nk
    C = params["fc_wT"].shape[-1]
    ids = token_ids.reshape(B * L, 1).astype(jnp.int32)

    kernel = functools.partial(_fused_cnn_kernel, ksizes=tuple(kernel_sizes),
                               L=L, F=F)
    probs, feats = pl.pallas_call(
        kernel,
        in_specs=[pl.BlockSpec(memory_space=pltpu.MemorySpace.VMEM)] * 7,
        out_specs=(pl.BlockSpec(memory_space=pltpu.MemorySpace.VMEM),
                   pl.BlockSpec(memory_space=pltpu.MemorySpace.VMEM)),
        out_shape=(jax.ShapeDtypeStruct((B, C), jnp.float32),
                   jax.ShapeDtypeStruct((B, nk * F), jnp.float32)),
    )(ids, emb_table, params["w_all"], params["bias_bm"], params["perm"],
      params["fc_wT"], params["fc_b"])
    return probs, feats


# --------------------------------------------------------------------------- #
# Pure-JAX reference that mirrors the torch ops literally (for verification)
# --------------------------------------------------------------------------- #
def ref_forward(token_ids, emb_table, conv_ws, conv_bs, fc_w, fc_b, kernel_sizes):
    B, L = token_ids.shape
    D = emb_table.shape[1]
    emb = emb_table[token_ids]
    x = emb.reshape(B, 1, L * D)
    outs = []
    for ks, w, b in zip(kernel_sizes, conv_ws, conv_bs):
        T = L - ks + 1
        cols = []
        for t in range(T):
            window = x[:, 0, t * D:t * D + ks * D]                  # (B, k*D)
            cols.append(window @ w[:, 0, :].T + b)                  # (B, F)
        s = jnp.maximum(jnp.stack(cols, axis=-1), 0.0)              # (B, F, T)
        outs.append(jnp.max(s, axis=-1, keepdims=True))             # (B, F, 1)
    out = jnp.concatenate(outs, axis=2).reshape(B, -1)
    logits = out @ fc_w.T + fc_b
    return jax.nn.softmax(logits, axis=1), out


if __name__ == "__main__":
    # Small shapes consistent with the module's forward.
    B, L, D, F, V = 2, 8, 32, 16, 50
    kernel_sizes = (3, 4, 5)
    n_classes = 2

    key = jax.random.PRNGKey(0)
    keys = jax.random.split(key, 10)

    emb_table = (jax.random.normal(keys[0], (V, D), jnp.float32) * 0.1)
    token_ids = jax.random.randint(keys[1], (B, L), 0, V, dtype=jnp.int32)

    conv_ws, conv_bs = [], []
    for i, ks in enumerate(kernel_sizes):
        bound = 1.0 / np.sqrt(ks * D)
        conv_ws.append(jax.random.uniform(keys[2 + i], (F, 1, ks * D),
                                          jnp.float32, -bound, bound))
        conv_bs.append(jax.random.uniform(keys[5 + i], (F,),
                                          jnp.float32, -bound, bound))

    fc_in = F * len(kernel_sizes)
    bound = 1.0 / np.sqrt(fc_in)
    fc_w = jax.random.uniform(keys[8], (n_classes, fc_in), jnp.float32, -bound, bound)
    fc_b = jax.random.uniform(keys[9], (n_classes,), jnp.float32, -bound, bound)

    # One-time packing (would live next to weight loading in a real model).
    params = pack_params(conv_ws, conv_bs, fc_w, fc_b, kernel_sizes, D, F)

    probs, feats = cnn_forward(token_ids, emb_table, params, kernel_sizes)
    jax.block_until_ready((probs, feats))

    ref_probs, ref_feats = ref_forward(token_ids, emb_table, conv_ws, conv_bs,
                                       fc_w, fc_b, kernel_sizes)
    # Features must match tightly (only fp32 accumulation-order differences).
    np.testing.assert_allclose(np.asarray(feats), np.asarray(ref_feats),
                               rtol=1e-5, atol=1e-5)
    # Probabilities use the EUP approximate reciprocal -> slightly looser check.
    np.testing.assert_allclose(np.asarray(probs), np.asarray(ref_probs),
                               rtol=5e-3, atol=5e-3)
    np.testing.assert_allclose(np.asarray(probs).sum(axis=1), np.ones(B),
                               rtol=5e-3, atol=5e-3)

    print("KERNEL_OK")
</pallas_src>

<mosaic_0001>
module attributes {stable_mosaic.version = 11 : i64} {
  func.func @_fused_cnn_kernel(%arg0: memref<16x1xi32, #tpu.memory_space<vmem>>, %arg1: memref<50x32xf32, #tpu.memory_space<vmem>>, %arg2: memref<32x192xf32, #tpu.memory_space<vmem>>, %arg3: memref<1x48xf32, #tpu.memory_space<vmem>>, %arg4: memref<48x48xf32, #tpu.memory_space<vmem>>, %arg5: memref<48x2xf32, #tpu.memory_space<vmem>>, %arg6: memref<1x2xf32, #tpu.memory_space<vmem>>, %arg7: memref<2x2xf32, #tpu.memory_space<vmem>>, %arg8: memref<2x48xf32, #tpu.memory_space<vmem>>) attributes {dimension_semantics = [], scalar_prefetch = 0 : i64, scratch_operands = 0 : i64, tpu.core_type = #tpu.core_type<tc>} {
    %c0 = arith.constant 0 : index
    %c0_0 = arith.constant 0 : index
    %0 = vector.load %arg0[%c0, %c0_0] : memref<16x1xi32, #tpu.memory_space<vmem>>, vector<16x1xi32>
    %1 = tpu.iota {dimensions = array<i32: 1>} : vector<16x50xi32>
    %2 = vector.broadcast %0 : vector<16x1xi32> to vector<16x50xi32>
    %3 = arith.cmpi eq, %1, %2 : vector<16x50xi32>
    %4 = arith.extui %3 : vector<16x50xi1> to vector<16x50xi32>
    %5 = arith.sitofp %4 : vector<16x50xi32> to vector<16x50xf32>
    %c0_1 = arith.constant 0 : index
    %c0_2 = arith.constant 0 : index
    %6 = vector.load %arg1[%c0_1, %c0_2] : memref<50x32xf32, #tpu.memory_space<vmem>>, vector<50x32xf32>
    %cst = arith.constant dense<0.000000e+00> : vector<16x32xf32>
    %7 = tpu.matmul %5, %6, %cst {dimension_numbers = #tpu.dot_dimension_numbers<[1], [0], [0], [1], [0, 0, 1, 1], [], []>} : vector<16x50xf32>, vector<50x32xf32>, vector<16x32xf32> -> vector<16x32xf32>
    %c0_3 = arith.constant 0 : index
    %c0_4 = arith.constant 0 : index
    %8 = vector.load %arg2[%c0_3, %c0_4] : memref<32x192xf32, #tpu.memory_space<vmem>>, vector<32x192xf32>
    %cst_5 = arith.constant dense<0.000000e+00> : vector<16x192xf32>
    %9 = tpu.matmul %7, %8, %cst_5 {dimension_numbers = #tpu.dot_dimension_numbers<[1], [0], [0], [1], [0, 0, 1, 1], [], []>} : vector<16x32xf32>, vector<32x192xf32>, vector<16x192xf32> -> vector<16x192xf32>
    %10 = vector.shape_cast %9 : vector<16x192xf32> to vector<2x8x192xf32>
    %11 = vector.extract_strided_slice %10 {offsets = [0, 0, 0], sizes = [2, 6, 16], strides = [1, 1, 1]} : vector<2x8x192xf32> to vector<2x6x16xf32>
    %12 = vector.extract_strided_slice %10 {offsets = [0, 1, 16], sizes = [2, 6, 16], strides = [1, 1, 1]} : vector<2x8x192xf32> to vector<2x6x16xf32>
    %13 = arith.addf %11, %12 : vector<2x6x16xf32>
    %14 = vector.extract_strided_slice %10 {offsets = [0, 2, 32], sizes = [2, 6, 16], strides = [1, 1, 1]} : vector<2x8x192xf32> to vector<2x6x16xf32>
    %15 = arith.addf %13, %14 : vector<2x6x16xf32>
    %cst_6 = arith.constant dense<0xFF800000> : vector<2x16xf32>
    %16 = vector.multi_reduction <maximumf>, %15, %cst_6 [1] : vector<2x6x16xf32> to vector<2x16xf32>
    %17 = vector.extract_strided_slice %10 {offsets = [0, 0, 48], sizes = [2, 5, 16], strides = [1, 1, 1]} : vector<2x8x192xf32> to vector<2x5x16xf32>
    %18 = vector.extract_strided_slice %10 {offsets = [0, 1, 64], sizes = [2, 5, 16], strides = [1, 1, 1]} : vector<2x8x192xf32> to vector<2x5x16xf32>
    %19 = arith.addf %17, %18 : vector<2x5x16xf32>
    %20 = vector.extract_strided_slice %10 {offsets = [0, 2, 80], sizes = [2, 5, 16], strides = [1, 1, 1]} : vector<2x8x192xf32> to vector<2x5x16xf32>
    %21 = arith.addf %19, %20 : vector<2x5x16xf32>
    %22 = vector.extract_strided_slice %10 {offsets = [0, 3, 96], sizes = [2, 5, 16], strides = [1, 1, 1]} : vector<2x8x192xf32> to vector<2x5x16xf32>
    %23 = arith.addf %21, %22 : vector<2x5x16xf32>
    %cst_7 = arith.constant dense<0xFF800000> : vector<2x16xf32>
    %24 = vector.multi_reduction <maximumf>, %23, %cst_7 [1] : vector<2x5x16xf32> to vector<2x16xf32>
    %25 = vector.extract_strided_slice %10 {offsets = [0, 0, 112], sizes = [2, 4, 16], strides = [1, 1, 1]} : vector<2x8x192xf32> to vector<2x4x16xf32>
    %26 = vector.extract_strided_slice %10 {offsets = [0, 1, 128], sizes = [2, 4, 16], strides = [1, 1, 1]} : vector<2x8x192xf32> to vector<2x4x16xf32>
    %27 = arith.addf %25, %26 : vector<2x4x16xf32>
    %28 = vector.extract_strided_slice %10 {offsets = [0, 2, 144], sizes = [2, 4, 16], strides = [1, 1, 1]} : vector<2x8x192xf32> to vector<2x4x16xf32>
    %29 = arith.addf %27, %28 : vector<2x4x16xf32>
    %30 = vector.extract_strided_slice %10 {offsets = [0, 3, 160], sizes = [2, 4, 16], strides = [1, 1, 1]} : vector<2x8x192xf32> to vector<2x4x16xf32>
    %31 = arith.addf %29, %30 : vector<2x4x16xf32>
    %32 = vector.extract_strided_slice %10 {offsets = [0, 4, 176], sizes = [2, 4, 16], strides = [1, 1, 1]} : vector<2x8x192xf32> to vector<2x4x16xf32>
    %33 = arith.addf %31, %32 : vector<2x4x16xf32>
    %cst_8 = arith.constant dense<0xFF800000> : vector<2x16xf32>
    %34 = vector.multi_reduction <maximumf>, %33, %cst_8 [1] : vector<2x4x16xf32> to vector<2x16xf32>
    %35 = tpu.concatenate %16, %24, %34 in 1 : vector<2x16xf32>, vector<2x16xf32>, vector<2x16xf32> -> vector<2x48xf32>
    %c0_9 = arith.constant 0 : index
    %c0_10 = arith.constant 0 : index
    %36 = vector.load %arg3[%c0_9, %c0_10] : memref<1x48xf32, #tpu.memory_space<vmem>>, vector<1x48xf32>
    %37 = vector.broadcast %36 : vector<1x48xf32> to vector<2x48xf32>
    %38 = arith.addf %35, %37 : vector<2x48xf32>
    %cst_11 = arith.constant 0.000000e+00 : f32
    %39 = vector.broadcast %cst_11 : f32 to vector<2x48xf32>
    %40 = arith.maximumf %38, %39 : vector<2x48xf32>
    %c0_12 = arith.constant 0 : index
    %c0_13 = arith.constant 0 : index
    %41 = vector.load %arg4[%c0_12, %c0_13] : memref<48x48xf32, #tpu.memory_space<vmem>>, vector<48x48xf32>
    %cst_14 = arith.constant dense<0.000000e+00> : vector<2x48xf32>
    %42 = tpu.matmul %40, %41, %cst_14 {dimension_numbers = #tpu.dot_dimension_numbers<[1], [0], [0], [1], [0, 0, 1, 1], [], []>} : vector<2x48xf32>, vector<48x48xf32>, vector<2x48xf32> -> vector<2x48xf32>
    %c0_15 = arith.constant 0 : index
    %c0_16 = arith.constant 0 : index
    %43 = vector.load %arg8[%c0_15, %c0_16] : memref<2x48xf32, #tpu.memory_space<vmem>>, vector<2x48xf32>
    tpu.vector_store %arg8[%c0_15, %c0_16], %42 {strides = array<i32>} : memref<2x48xf32, #tpu.memory_space<vmem>>, vector<2x48xf32>,
    %c0_17 = arith.constant 0 : index
    %c0_18 = arith.constant 0 : index
    %44 = vector.load %arg5[%c0_17, %c0_18] : memref<48x2xf32, #tpu.memory_space<vmem>>, vector<48x2xf32>
    %cst_19 = arith.constant dense<0.000000e+00> : vector<2x2xf32>
    %45 = tpu.matmul %42, %44, %cst_19 {dimension_numbers = #tpu.dot_dimension_numbers<[1], [0], [0], [1], [0, 0, 1, 1], [], []>} : vector<2x48xf32>, vector<48x2xf32>, vector<2x2xf32> -> vector<2x2xf32>
    %c0_20 = arith.constant 0 : index
    %c0_21 = arith.constant 0 : index
    %46 = vector.load %arg6[%c0_20, %c0_21] : memref<1x2xf32, #tpu.memory_space<vmem>>, vector<1x2xf32>
    %47 = vector.broadcast %46 : vector<1x2xf32> to vector<2x2xf32>
    %48 = arith.addf %45, %47 : vector<2x2xf32>
    %cst_22 = arith.constant dense<0xFF800000> : vector<2xf32>
    %49 = vector.multi_reduction <maximumf>, %48, %cst_22 [1] : vector<2x2xf32> to vector<2xf32>
    %50 = vector.shape_cast %49 : vector<2xf32> to vector<2x1xf32>
    %51 = vector.broadcast %50 : vector<2x1xf32> to vector<2x2xf32>
    %52 = arith.subf %48, %51 : vector<2x2xf32>
    %53 = math.exp %52 : vector<2x2xf32>
    %cst_23 = arith.constant dense<0.000000e+00> : vector<2xf32>
    %54 = vector.multi_reduction <add>, %53, %cst_23 [1] : vector<2x2xf32> to vector<2xf32>
    %55 = vector.shape_cast %54 : vector<2xf32> to vector<2x1xf32>
    %56 = tpu.reciprocal %55 {approx = true} : vector<2x1xf32> -> vector<2x1xf32>
    %57 = vector.broadcast %56 : vector<2x1xf32> to vector<2x2xf32>
    %58 = arith.mulf %53, %57 : vector<2x2xf32>
    %c0_24 = arith.constant 0 : index
    %c0_25 = arith.constant 0 : index
    %59 = vector.load %arg7[%c0_24, %c0_25] : memref<2x2xf32, #tpu.memory_space<vmem>>, vector<2x2xf32>
    tpu.vector_store %arg7[%c0_24, %c0_25], %58 {strides = array<i32>} : memref<2x2xf32, #tpu.memory_space<vmem>>, vector<2x2xf32>,
    return
  }
}

</mosaic_0001>

<llo_original>
// kernel: cnn_forward.1
$region0: #{cnn_forward.1}
  #allocation0 [shape = 'u32[]', space=smem, size = 0x4, offset = 0x4, fixed_abs, tag = 'smem constant byte address 0x4 - core index']
  #allocation1 [shape = 'u32[144,128]{1,0:T(1,128)}', space=vmem, size = 0x12000, scoped, tag = 'internal scratch']
  %s0 = inlined_call_operand.vmem [shape: s32[16,1], index: 0, kind: input, shape index: {}]
  %s1 = inlined_call_operand.vmem [shape: f32[50,32], index: 1, kind: input, shape index: {}]
  %s2 = inlined_call_operand.vmem [shape: f32[32,192], index: 2, kind: input, shape index: {}]
  %s3 = inlined_call_operand.vmem [shape: f32[1,48], index: 3, kind: input, shape index: {}]
  %s4 = inlined_call_operand.vmem [shape: f32[48,48], index: 4, kind: input, shape index: {}]
  %s5 = inlined_call_operand.vmem [shape: f32[48,2], index: 5, kind: input, shape index: {}]
  %s6 = inlined_call_operand.vmem [shape: f32[1,2], index: 6, kind: input, shape index: {}]
  %s7 = inlined_call_operand.hbm [shape: f32[2,2], index: 7, kind: output, shape index: {0}]
  %s8 = inlined_call_operand.hbm [shape: f32[2,48], index: 8, kind: output, shape index: {1}]
  %9 = xla_tuple %s7, %s8
  %s10 = sld [smem:[#allocation0]]
  $region46: #{cnn_forward.1} parent=0
    _
  %s12 = ssub.s32 1, %s10
  %s13 = scalar_select 0, %s12, %s10
  $region1: #{cnn_forward.1} parent=0
    #allocation2 [shape = 'u8[1024]{0}', space=vmem, size = 0x400, scoped, tag = 'output window, operand 0, single buffered']
    #allocation3 [shape = 's32[1]{0}', space=sflag, size = 0x4, scoped, tag = 'scoped memory for cnn_forward.1']
    #allocation4 [shape = 'u8[1024]{0}', space=vmem, size = 0x400, scoped, tag = 'output window, operand 1, single buffered']
    #allocation5 [shape = 's32[1]{0}', space=sflag, size = 0x4, scoped, tag = 'scoped memory for cnn_forward.1']
    %14 = vsyncpa [#allocation3], 0
    %15 = vsyncpa [#allocation5], 0
    // Predicated region
    $region2: #{cnn_forward.1} parent=1 // pred_check
      _
    $region3: #{cnn_forward.1} parent=1 // pred_check_branch
      %17 = sbr.rel (0) target = $region5
    $region4: #{cnn_forward.1} parent=1 // pred_region
      _
    $region5: #{cnn_forward.1} parent=1 // pred_fallthru
      _
    // Predicated region
    $region6: #{cnn_forward.1} parent=1 // pred_check
      _
    $region7: #{cnn_forward.1} parent=1 // pred_check_branch
      %19 = sbr.rel (0) target = $region9
    $region8: #{cnn_forward.1} parent=1 // pred_region
      _
    $region9: #{cnn_forward.1} parent=1 // pred_fallthru
      _
    // Predicated region
    $region10: #{cnn_forward.1} parent=1 // pred_check
      _
    $region11: #{cnn_forward.1} parent=1 // pred_check_branch
      %21 = sbr.rel (0) target = $region13
    $region12: #{cnn_forward.1} parent=1 // pred_region
      _
    $region13: #{cnn_forward.1} parent=1 // pred_fallthru
      _
    // Predicated region
    $region14: #{cnn_forward.1} parent=1 // pred_check
      _
    $region15: #{cnn_forward.1} parent=1 // pred_check_branch
      %23 = sbr.rel (0) target = $region17
    $region16: #{cnn_forward.1} parent=1 // pred_region
      _
    $region17: #{cnn_forward.1} parent=1 // pred_fallthru
      _
    // Predicated region
    $region18: #{cnn_forward.1} parent=1 // pred_check
      _
    $region19: #{cnn_forward.1} parent=1 // pred_check_branch
      %25 = sbr.rel (0) target = $region21
    $region20: #{cnn_forward.1} parent=1 // pred_region
      _
    $region21: #{cnn_forward.1} parent=1 // pred_fallthru
      _
    // Predicated region
    $region22: #{cnn_forward.1} parent=1 // pred_check
      _
    $region23: #{cnn_forward.1} parent=1 // pred_check_branch
      %27 = sbr.rel (0) target = $region25
    $region24: #{cnn_forward.1} parent=1 // pred_region
      _
    $region25: #{cnn_forward.1} parent=1 // pred_fallthru
      _
    // Predicated region
    $region26: #{cnn_forward.1} parent=1 // pred_check
      _
    $region27: #{cnn_forward.1} parent=1 // pred_check_branch
      %29 = sbr.rel (0) target = $region29
    $region28: #{cnn_forward.1} parent=1 // pred_region
      _
    $region29: #{cnn_forward.1} parent=1 // pred_fallthru
      _
    %v30 = vld [vmem:[%s0] sm:$0xff]
    %v31 = vld [vmem:[%s0 + $0x8] sm:$0xff]
    %v32 = vlaneseq
    %v33 = vand.u32 %v32, 127
    %34 = vset.pattern.permute.xlu0 0
    %35 = vperm.xlu0 %34, %v30
    %v36 = vpop.permute.xlu0 %35
    %37 = vset.pattern.permute.xlu0 0
    %38 = vperm.xlu0 %37, %v31
    %v39 = vpop.permute.xlu0 %38
    %vm40 = vcmp.eq.s32.totalorder %v33, %v36
    %vm41 = vcmp.eq.s32.totalorder %v33, %v39
    %v42 = vsel %vm40, 1, 0
    %v43 = vsel %vm41, 1, 0
    %v44 = vcvt.s32.f32 %v42
    %v45 = vcvt.s32.f32 %v43
    %v46 = vld [vmem:[%s1] sm:$0xff]
    %v47 = vld [vmem:[%s1 + $0x8] sm:$0xff]
    %v48 = vld [vmem:[%s1 + $0x10] sm:$0xff]
    %v49 = vld [vmem:[%s1 + $0x18] sm:$0xff]
    %v50 = vld [vmem:[%s1 + $0x20] sm:$0xff]
    %v51 = vld [vmem:[%s1 + $0x28] sm:$0xff]
    %v52 = vld [vmem:[%s1 + $0x30] sm:$0x3]
    %vm53 = vcmask 408576
    %v55 = vsel %vm53, %v44, 0
    %v58 = vsel %vm53, %v45, 0
    %vm60 = vcmask 1041408
    %v62 = vsel %vm60, %v52, 0
    %64 = vmatprep.subr.mxu0 0.0
    %65 = vmatpush1.msra.mxu0 %v46
    %66 = vmatprep.subr.mxu0 0.0
    %67 = vmatpush1.msra.mxu0 %v47
    %68 = vmatprep.subr.mxu0 0.0
    %69 = vmatpush1.msra.mxu0 %v48
    %70 = vmatprep.subr.mxu0 0.0
    %71 = vmatpush1.msra.mxu0 %v49
    %72 = vmatprep.subr.mxu0 0.0
    %73 = vmatpush1.msra.mxu0 %v50
    %74 = vmatprep.subr.mxu0 0.0
    %75 = vmatpush1.msra.mxu0 %v51
    %76 = vmatprep.subr.mxu0 0.0
    %77 = vmatpush1.msra.mxu0 %v62
    %78 = vmatprep.subr.mxu0 0.0
    %79 = vmatpush1.msra.mxu0 0.0
    %80 = vmatprep.subr.mxu0 0.0
    %81 = vmatpush1.msra.mxu0 0.0
    %82 = vmatprep.subr.mxu0 0.0
    %83 = vmatpush1.msra.mxu0 0.0
    %84 = vmatprep.subr.mxu0 0.0
    %85 = vmatpush1.msra.mxu0 0.0
    %86 = vmatprep.subr.mxu0 0.0
    %87 = vmatpush1.msra.mxu0 0.0
    %88 = vmatprep.subr.mxu0 0.0
    %89 = vmatpush1.msra.mxu0 0.0
    %90 = vmatprep.subr.mxu0 0.0
    %91 = vmatpush1.msra.mxu0 0.0
    %92 = vmatprep.subr.mxu0 0.0
    %93 = vmatpush1.msra.mxu0 0.0
    %94 = vmatprep.subr.mxu0 0.0
    %95 = vmatpush1.msra.mxu0 0.0
    %96 = vmatprep.subr.mxu0 0.0
    %97 = vmatpush1.msra.mxu0 0.0
    %98 = vmatprep.subr.mxu0 0.0
    %99 = vmatpush1.msra.mxu0 0.0
    %100 = vmatprep.subr.mxu0 0.0
    %101 = vmatpush1.msra.mxu0 0.0
    %102 = vmatprep.subr.mxu0 0.0
    %103 = vmatpush1.msra.mxu0 0.0
    %104 = vmatprep.subr.mxu0 0.0
    %105 = vmatpush1.msra.mxu0 0.0
    %106 = vmatprep.subr.mxu0 0.0
    %107 = vmatpush1.msra.mxu0 0.0
    %108 = vmatprep.subr.mxu0 0.0
    %109 = vmatpush1.msra.mxu0 0.0
    %110 = vmatprep.subr.mxu0 0.0
    %111 = vmatpush1.msra.mxu0 0.0
    %112 = vmatprep.subr.mxu0 0.0
    %113 = vmatpush1.msra.mxu0 0.0
    %114 = vmatprep.subr.mxu0 0.0
    %115 = vmatpush1.msra.mxu0 0.0
    %116 = vmatprep.subr.mxu0 0.0
    %117 = vmatpush1.msra.mxu0 0.0
    %118 = vmatprep.subr.mxu0 0.0
    %119 = vmatpush1.msra.mxu0 0.0
    %120 = vmatprep.subr.mxu0 0.0
    %121 = vmatpush1.msra.mxu0 0.0
    %122 = vmatprep.subr.mxu0 0.0
    %123 = vmatpush1.msra.mxu0 0.0
    %124 = vmatprep.subr.mxu0 0.0
    %125 = vmatpush1.msra.mxu0 0.0
    %126 = vmatprep.subr.mxu0 0.0
    %127 = vmatpush1.msra.mxu0 0.0
    %128 = vmatprep.mubr.f32.mxu0 0.0
    %129 = vmatmul.mubr.f32.gmra.mrb[0].mxu0 %v55
    %v130 = vpop.f32.mrb[0].mxu0
    %v131 = vadd.f32 0.0, %v130
    %v132 = vpop.f32.mrb[0].mxu0
    %133 = vmatprep.mubr.f32.mxu0 0.0
    %134 = vmatmul.mubr.f32.gmra.mrb[0].mxu0 %v58
    %v135 = vpop.f32.mrb[0].mxu0
    %v136 = vadd.f32 0.0, %v135
    %v137 = vpop.f32.mrb[0].mxu0
    %138 = vdwg.mxu0
    %v139 = vld [vmem:[%s2] sm:$0xff]
    %v140 = vld [vmem:[%s2 + $0x8] sm:$0xff]
    %v141 = vld [vmem:[%s2 + $0x10] sm:$0xff]
    %v142 = vld [vmem:[%s2 + $0x18] sm:$0xff]
    %v143 = vld [vmem:[%s2 + $0x20] sm:$0xff]
    %v144 = vld [vmem:[%s2 + $0x28] sm:$0xff]
    %v145 = vld [vmem:[%s2 + $0x30] sm:$0xff]
    %v146 = vld [vmem:[%s2 + $0x38] sm:$0xff]
    %vm147 = vcmask 261120
    %v149 = vsel %vm147, %v131, 0
    %v152 = vsel %vm147, %v136, 0
    %154 = vmatprep.subr.mxu0 %v140
    %155 = vmatpush1.msra.mxu0 %v139
    %156 = vmatprep.subr.mxu0 %v142
    %157 = vmatpush1.msra.mxu0 %v141
    %158 = vmatprep.subr.mxu0 %v144
    %159 = vmatpush1.msra.mxu0 %v143
    %160 = vmatprep.subr.mxu0 %v146
    %161 = vmatpush1.msra.mxu0 %v145
    %162 = vmatprep.subr.mxu0 0.0
    %163 = vmatpush1.msra.mxu0 0.0
    %164 = vmatprep.subr.mxu0 0.0
    %165 = vmatpush1.msra.mxu0 0.0
    %166 = vmatprep.subr.mxu0 0.0
    %167 = vmatpush1.msra.mxu0 0.0
    %168 = vmatprep.subr.mxu0 0.0
    %169 = vmatpush1.msra.mxu0 0.0
    %170 = vmatprep.subr.mxu0 0.0
    %171 = vmatpush1.msra.mxu0 0.0
    %172 = vmatprep.subr.mxu0 0.0
    %173 = vmatpush1.msra.mxu0 0.0
    %174 = vmatprep.subr.mxu0 0.0
    %175 = vmatpush1.msra.mxu0 0.0
    %176 = vmatprep.subr.mxu0 0.0
    %177 = vmatpush1.msra.mxu0 0.0
    %178 = vmatprep.subr.mxu0 0.0
    %179 = vmatpush1.msra.mxu0 0.0
    %180 = vmatprep.subr.mxu0 0.0
    %181 = vmatpush1.msra.mxu0 0.0
    %182 = vmatprep.subr.mxu0 0.0
    %183 = vmatpush1.msra.mxu0 0.0
    %184 = vmatprep.subr.mxu0 0.0
    %185 = vmatpush1.msra.mxu0 0.0
    %186 = vmatprep.subr.mxu0 0.0
    %187 = vmatpush1.msra.mxu0 0.0
    %188 = vmatprep.subr.mxu0 0.0
    %189 = vmatpush1.msra.mxu0 0.0
    %190 = vmatprep.subr.mxu0 0.0
    %191 = vmatpush1.msra.mxu0 0.0
    %192 = vmatprep.subr.mxu0 0.0
    %193 = vmatpush1.msra.mxu0 0.0
    %194 = vmatprep.subr.mxu0 0.0
    %195 = vmatpush1.msra.mxu0 0.0
    %196 = vmatprep.subr.mxu0 0.0
    %197 = vmatpush1.msra.mxu0 0.0
    %198 = vmatprep.subr.mxu0 0.0
    %199 = vmatpush1.msra.mxu0 0.0
    %200 = vmatprep.subr.mxu0 0.0
    %201 = vmatpush1.msra.mxu0 0.0
    %202 = vmatprep.subr.mxu0 0.0
    %203 = vmatpush1.msra.mxu0 0.0
    %204 = vmatprep.subr.mxu0 0.0
    %205 = vmatpush1.msra.mxu0 0.0
    %206 = vmatprep.subr.mxu0 0.0
    %207 = vmatpush1.msra.mxu0 0.0
    %208 = vmatprep.subr.mxu0 0.0
    %209 = vmatpush1.msra.mxu0 0.0
    %210 = vmatprep.subr.mxu0 0.0
    %211 = vmatpush1.msra.mxu0 0.0
    %212 = vmatprep.subr.mxu0 0.0
    %213 = vmatpush1.msra.mxu0 0.0
    %214 = vmatprep.subr.mxu0 0.0
    %215 = vmatpush1.msra.mxu0 0.0
    %216 = vmatprep.subr.mxu0 0.0
    %217 = vmatpush1.msra.mxu0 0.0
    %218 = vmatprep.mubr.f32.mxu0 0.0
    %219 = vmatmul.mubr.f32.gmra.mrb[0].mxu0 %v149
    %v220 = vpop.f32.mrb[0].mxu0
    %v221 = vadd.f32 0.0, %v220
    %v222 = vpop.f32.mrb[0].mxu0
    %v223 = vadd.f32 0.0, %v222
    %224 = vmatprep.mubr.f32.mxu0 0.0
    %225 = vmatmul.mubr.f32.gmra.mrb[0].mxu0 %v152
    %v226 = vpop.f32.mrb[0].mxu0
    %v227 = vadd.f32 0.0, %v226
    %v228 = vpop.f32.mrb[0].mxu0
    %v229 = vadd.f32 0.0, %v228
    %230 = vdwg.mxu0
    %v233 = vrot.slane %v221, 1
    %v234 = vrot.slane %v227, 1
    %235 = vrot.lane.b32.xlu0 %v233, 112
    %v236 = vpop.permute.xlu0 %235
    %237 = vrot.lane.b32.xlu0 %v234, 112
    %v238 = vpop.permute.xlu0 %237
    %v241 = vadd.f32 %v221, %v236
    %v242 = vadd.f32 %v227, %v238
    %v243 = vrot.slane %v221, 2
    %v244 = vrot.slane %v227, 2
    %245 = vrot.lane.b32.xlu0 %v243, 96
    %v246 = vpop.permute.xlu0 %245
    %247 = vrot.lane.b32.xlu0 %v244, 96
    %v248 = vpop.permute.xlu0 %247
    %v251 = vadd.f32 %v241, %v246
    %v252 = vadd.f32 %v242, %v248
    %vm253 = vcmask 128000
    %v254 = vsel %vm253, %v251, -inf
    %v255 = vrot.slane %v254, 4
    %v256 = vmax.f32 %v254, %v255
    %v257 = vrot.slane %v256, 2
    %v258 = vmax.f32 %v256, %v257
    %v259 = vrot.slane %v258, 1
    %v260 = vmax.f32 %v258, %v259
    %v261 = vsel %vm253, %v252, -inf
    %v262 = vrot.slane %v261, 4
    %v263 = vmax.f32 %v261, %v262
    %v264 = vrot.slane %v263, 2
    %v265 = vmax.f32 %v263, %v264
    %v266 = vrot.slane %v265, 1
    %v267 = vmax.f32 %v265, %v266
    %v268 = vrot.slane %v221, 3
    %v269 = vrot.slane %v227, 3
    %270 = vrot.lane.b32.xlu0 %v268, 80
    %v271 = vpop.permute.xlu0 %270
    %272 = vrot.lane.b32.xlu0 %v269, 80
    %v273 = vpop.permute.xlu0 %272
    %v276 = vadd.f32 %v251, %v271
    %v277 = vadd.f32 %v252, %v273
    %vm278 = vcmask 520576
    %v279 = vsel %vm278, %v276, -inf
    %v280 = vrot.slane %v279, 4
    %v281 = vmax.f32 %v279, %v280
    %v282 = vrot.slane %v281, 2
    %v283 = vmax.f32 %v281, %v282
    %v284 = vrot.slane %v283, 1
    %v285 = vmax.f32 %v283, %v284
    %v286 = vsel %vm278, %v277, -inf
    %v287 = vrot.slane %v286, 4
    %v288 = vmax.f32 %v286, %v287
    %v289 = vrot.slane %v288, 2
    %v290 = vmax.f32 %v288, %v289
    %v291 = vrot.slane %v290, 1
    %v292 = vmax.f32 %v290, %v291
    %v295 = vrot.slane %v223, 1
    %v296 = vrot.slane %v229, 1
    %297 = vrot.lane.b32.xlu0 %v295, 112
    %v298 = vpop.permute.xlu0 %297
    %299 = vrot.lane.b32.xlu0 %v296, 112
    %v300 = vpop.permute.xlu0 %299
    %v303 = vadd.f32 %v221, %v298
    %v304 = vadd.f32 %v227, %v300
    %v305 = vrot.slane %v223, 2
    %v306 = vrot.slane %v229, 2
    %307 = vrot.lane.b32.xlu0 %v305, 96
    %v308 = vpop.permute.xlu0 %307
    %309 = vrot.lane.b32.xlu0 %v306, 96
    %v310 = vpop.permute.xlu0 %309
    %v313 = vadd.f32 %v303, %v308
    %v314 = vadd.f32 %v304, %v310
    %v315 = vrot.slane %v223, 3
    %v316 = vrot.slane %v229, 3
    %317 = vrot.lane.b32.xlu0 %v315, 80
    %v318 = vpop.permute.xlu0 %317
    %319 = vrot.lane.b32.xlu0 %v316, 80
    %v320 = vpop.permute.xlu0 %319
    %v323 = vadd.f32 %v313, %v318
    %v324 = vadd.f32 %v314, %v320
    %v325 = vrot.slane %v223, 4
    %v326 = vrot.slane %v229, 4
    %327 = vrot.lane.b32.xlu0 %v325, 64
    %v328 = vpop.permute.xlu0 %327
    %329 = vrot.lane.b32.xlu0 %v326, 64
    %v330 = vpop.permute.xlu0 %329
    %v333 = vadd.f32 %v323, %v328
    %v334 = vadd.f32 %v324, %v330
    %vm335 = vcmask 1044352
    %v336 = vsel %vm335, %v333, -inf
    %v337 = vrot.slane %v336, 4
    %v338 = vmax.f32 %v336, %v337
    %v339 = vrot.slane %v338, 2
    %v340 = vmax.f32 %v338, %v339
    %v341 = vrot.slane %v340, 1
    %v342 = vmax.f32 %v340, %v341
    %v343 = vsel %vm335, %v334, -inf
    %v344 = vrot.slane %v343, 4
    %v345 = vmax.f32 %v343, %v344
    %v346 = vrot.slane %v345, 2
    %v347 = vmax.f32 %v345, %v346
    %v348 = vrot.slane %v347, 1
    %v349 = vmax.f32 %v347, %v348
    %vm352 = vcmask 1041409
    %v353 = vsel %vm352, %v267, %v260
    %v357 = vsel %vm352, %v292, %v285
    %358 = vrot.lane.b32.xlu0 %v357, 96
    %v359 = vpop.permute.xlu0 %358
    %v363 = vsel %vm352, %v349, %v342
    %364 = vrot.lane.b32.xlu0 %v363, 48
    %v365 = vpop.permute.xlu0 %364
    %vm367 = vcmask 130048
    %v368 = vsel %vm367, %v353, %v359
    %v369 = vsel %vm147, %v368, %v365
    %v370 = vld [vmem:[%s3] sm:$0x1]
    %v372 = vlaneseq
    %v373 = vshrl.u32 %v372, 7
    %v374 = vsub.s32 0, %v373
    %v375 = vrot.slane %v370, %v374
    %v377 = vadd.f32 %v369, %v375
    %v378 = vmax.f32 %v377, 0.0
    %v379 = vld [vmem:[%s4] sm:$0xff]
    %v380 = vld [vmem:[%s4 + $0x8] sm:$0xff]
    %v381 = vld [vmem:[%s4 + $0x10] sm:$0xff]
    %v382 = vld [vmem:[%s4 + $0x18] sm:$0xff]
    %v383 = vld [vmem:[%s4 + $0x20] sm:$0xff]
    %v384 = vld [vmem:[%s4 + $0x28] sm:$0xff]
    %vm385 = vcmask 392192
    %v387 = vsel %vm385, %v378, 0
    %389 = vmatprep.subr.mxu0 0.0
    %390 = vmatpush1.msra.mxu0 %v379
    %391 = vmatprep.subr.mxu0 0.0
    %392 = vmatpush1.msra.mxu0 %v380
    %393 = vmatprep.subr.mxu0 0.0
    %394 = vmatpush1.msra.mxu0 %v381
    %395 = vmatprep.subr.mxu0 0.0
    %396 = vmatpush1.msra.mxu0 %v382
    %397 = vmatprep.subr.mxu0 0.0
    %398 = vmatpush1.msra.mxu0 %v383
    %399 = vmatprep.subr.mxu0 0.0
    %400 = vmatpush1.msra.mxu0 %v384
    %401 = vmatprep.subr.mxu0 0.0
    %402 = vmatpush1.msra.mxu0 0.0
    %403 = vmatprep.subr.mxu0 0.0
    %404 = vmatpush1.msra.mxu0 0.0
    %405 = vmatprep.subr.mxu0 0.0
    %406 = vmatpush1.msra.mxu0 0.0
    %407 = vmatprep.subr.mxu0 0.0
    %408 = vmatpush1.msra.mxu0 0.0
    %409 = vmatprep.subr.mxu0 0.0
    %410 = vmatpush1.msra.mxu0 0.0
    %411 = vmatprep.subr.mxu0 0.0
    %412 = vmatpush1.msra.mxu0 0.0
    %413 = vmatprep.subr.mxu0 0.0
    %414 = vmatpush1.msra.mxu0 0.0
    %415 = vmatprep.subr.mxu0 0.0
    %416 = vmatpush1.msra.mxu0 0.0
    %417 = vmatprep.subr.mxu0 0.0
    %418 = vmatpush1.msra.mxu0 0.0
    %419 = vmatprep.subr.mxu0 0.0
    %420 = vmatpush1.msra.mxu0 0.0
    %421 = vmatprep.subr.mxu0 0.0
    %422 = vmatpush1.msra.mxu0 0.0
    %423 = vmatprep.subr.mxu0 0.0
    %424 = vmatpush1.msra.mxu0 0.0
    %425 = vmatprep.subr.mxu0 0.0
    %426 = vmatpush1.msra.mxu0 0.0
    %427 = vmatprep.subr.mxu0 0.0
    %428 = vmatpush1.msra.mxu0 0.0
    %429 = vmatprep.subr.mxu0 0.0
    %430 = vmatpush1.msra.mxu0 0.0
    %431 = vmatprep.subr.mxu0 0.0
    %432 = vmatpush1.msra.mxu0 0.0
    %433 = vmatprep.subr.mxu0 0.0
    %434 = vmatpush1.msra.mxu0 0.0
    %435 = vmatprep.subr.mxu0 0.0
    %436 = vmatpush1.msra.mxu0 0.0
    %437 = vmatprep.subr.mxu0 0.0
    %438 = vmatpush1.msra.mxu0 0.0
    %439 = vmatprep.subr.mxu0 0.0
    %440 = vmatpush1.msra.mxu0 0.0
    %441 = vmatprep.subr.mxu0 0.0
    %442 = vmatpush1.msra.mxu0 0.0
    %443 = vmatprep.subr.mxu0 0.0
    %444 = vmatpush1.msra.mxu0 0.0
    %445 = vmatprep.subr.mxu0 0.0
    %446 = vmatpush1.msra.mxu0 0.0
    %447 = vmatprep.subr.mxu0 0.0
    %448 = vmatpush1.msra.mxu0 0.0
    %449 = vmatprep.subr.mxu0 0.0
    %450 = vmatpush1.msra.mxu0 0.0
    %451 = vmatprep.subr.mxu0 0.0
    %452 = vmatpush1.msra.mxu0 0.0
    %453 = vmatprep.mubr.f32.mxu0 0.0
    %454 = vmatmul.mubr.f32.gmra.mrb[0].mxu0 %v387
    %v455 = vpop.f32.mrb[0].mxu0
    %v456 = vadd.f32 0.0, %v455
    %v457 = vpop.f32.mrb[0].mxu0
    %458 = vdwg.mxu0
    %vm459 = vcmask 386048
    %460 = vst.msk [vmem:[#allocation4] sm:$0x3] %vm459, %v456
    %v461 = vld [vmem:[%s5] sm:$0xff]
    %v462 = vld [vmem:[%s5 + $0x8] sm:$0xff]
    %v463 = vld [vmem:[%s5 + $0x10] sm:$0xff]
    %v464 = vld [vmem:[%s5 + $0x18] sm:$0xff]
    %v465 = vld [vmem:[%s5 + $0x20] sm:$0xff]
    %v466 = vld [vmem:[%s5 + $0x28] sm:$0xff]
    %v467 = vld [vmem:[%s6] sm:$0x1]
    %v469 = vlaneseq
    %v470 = vshrl.u32 %v469, 7
    %v471 = vsub.s32 0, %v470
    %v472 = vrot.slane %v467, %v471
    %v475 = vsel %vm385, %v456, 0
    %477 = vmatprep.subr.mxu0 0.0
    %478 = vmatpush1.msra.mxu0 %v461
    %479 = vmatprep.subr.mxu0 0.0
    %480 = vmatpush1.msra.mxu0 %v462
    %481 = vmatprep.subr.mxu0 0.0
    %482 = vmatpush1.msra.mxu0 %v463
    %483 = vmatprep.subr.mxu0 0.0
    %484 = vmatpush1.msra.mxu0 %v464
    %485 = vmatprep.subr.mxu0 0.0
    %486 = vmatpush1.msra.mxu0 %v465
    %487 = vmatprep.subr.mxu0 0.0
    %488 = vmatpush1.msra.mxu0 %v466
    %489 = vmatprep.subr.mxu0 0.0
    %490 = vmatpush1.msra.mxu0 0.0
    %491 = vmatprep.subr.mxu0 0.0
    %492 = vmatpush1.msra.mxu0 0.0
    %493 = vmatprep.subr.mxu0 0.0
    %494 = vmatpush1.msra.mxu0 0.0
    %495 = vmatprep.subr.mxu0 0.0
    %496 = vmatpush1.msra.mxu0 0.0
    %497 = vmatprep.subr.mxu0 0.0
    %498 = vmatpush1.msra.mxu0 0.0
    %499 = vmatprep.subr.mxu0 0.0
    %500 = vmatpush1.msra.mxu0 0.0
    %501 = vmatprep.subr.mxu0 0.0
    %502 = vmatpush1.msra.mxu0 0.0
    %503 = vmatprep.subr.mxu0 0.0
    %504 = vmatpush1.msra.mxu0 0.0
    %505 = vmatprep.subr.mxu0 0.0
    %506 = vmatpush1.msra.mxu0 0.0
    %507 = vmatprep.subr.mxu0 0.0
    %508 = vmatpush1.msra.mxu0 0.0
    %509 = vmatprep.subr.mxu0 0.0
    %510 = vmatpush1.msra.mxu0 0.0
    %511 = vmatprep.subr.mxu0 0.0
    %512 = vmatpush1.msra.mxu0 0.0
    %513 = vmatprep.subr.mxu0 0.0
    %514 = vmatpush1.msra.mxu0 0.0
    %515 = vmatprep.subr.mxu0 0.0
    %516 = vmatpush1.msra.mxu0 0.0
    %517 = vmatprep.subr.mxu0 0.0
    %518 = vmatpush1.msra.mxu0 0.0
    %519 = vmatprep.subr.mxu0 0.0
    %520 = vmatpush1.msra.mxu0 0.0
    %521 = vmatprep.subr.mxu0 0.0
    %522 = vmatpush1.msra.mxu0 0.0
    %523 = vmatprep.subr.mxu0 0.0
    %524 = vmatpush1.msra.mxu0 0.0
    %525 = vmatprep.subr.mxu0 0.0
    %526 = vmatpush1.msra.mxu0 0.0
    %527 = vmatprep.subr.mxu0 0.0
    %528 = vmatpush1.msra.mxu0 0.0
    %529 = vmatprep.subr.mxu0 0.0
    %530 = vmatpush1.msra.mxu0 0.0
    %531 = vmatprep.subr.mxu0 0.0
    %532 = vmatpush1.msra.mxu0 0.0
    %533 = vmatprep.subr.mxu0 0.0
    %534 = vmatpush1.msra.mxu0 0.0
    %535 = vmatprep.subr.mxu0 0.0
    %536 = vmatpush1.msra.mxu0 0.0
    %537 = vmatprep.subr.mxu0 0.0
    %538 = vmatpush1.msra.mxu0 0.0
    %539 = vmatprep.subr.mxu0 0.0
    %540 = vmatpush1.msra.mxu0 0.0
    %541 = vmatprep.mubr.f32.mxu0 0.0
    %542 = vmatmul.mubr.f32.gmra.mrb[0].mxu0 %v475
    %v543 = vpop.f32.mrb[0].mxu0
    %v544 = vadd.f32 %v472, %v543
    %v545 = vpop.f32.mrb[0].mxu0
    %546 = vdwg.mxu0
    %vm547 = vcmask 9216
    %v548 = vsel %vm547, %v544, -inf
    %549 = vmax.xlane.f32.xlu0 %v548
    %v550 = vpop.xlane.xlu0 %549
    %v551 = vsub.f32 %v544, %v550
    %v552 = vmul.f32 %v551, 1.442695
    %v553 = vpow.pop %v552
    %v554 = vsel %vm547, %v553, 0.0
    %555 = vadd.xlane.f32.xlu0 %v554
    %v556 = vpop.xlane.xlu0 %555
    %v557 = vrcp.pop %v556
    %v558 = vmul.f32 %v553, %v557
    %559 = vst.msk [vmem:[#allocation2] sm:$0x3] %vm547, %v558
    // Predicated region
    $region30: #{cnn_forward.1} parent=1 // pred_check
      _
    $region31: #{cnn_forward.1} parent=1 // pred_check_branch
      %561 = sbr.rel (0) target = $region33
    $region32: #{cnn_forward.1} parent=1 // pred_region
      %s563 = ssub.s32 32, 32
      %564 = vsyncadd [#allocation3], %s563
      %s566 = sshll.u32 [#allocation2], 4
      %s567 = int_to_ptr.vmem [resolvable:$true] %s566
      %569 = dma.vmem_to_hbm [thread:$0]  %s567, 32, %s7, [#allocation3]
    $region33: #{cnn_forward.1} parent=1 // pred_fallthru
      _
    // Predicated region
    $region34: #{cnn_forward.1} parent=1 // pred_check
      _
    $region35: #{cnn_forward.1} parent=1 // pred_check_branch
      %571 = sbr.rel (0) target = $region37
    $region36: #{cnn_forward.1} parent=1 // pred_region
      %s573 = ssub.s32 32, 32
      %574 = vsyncadd [#allocation5], %s573
      %s576 = sshll.u32 [#allocation4], 4
      %s577 = int_to_ptr.vmem [resolvable:$true] %s576
      %579 = dma.vmem_to_hbm [thread:$0]  %s577, 32, %s8, [#allocation5]
    $region37: #{cnn_forward.1} parent=1 // pred_fallthru
      _
    // Predicated region
    $region38: #{cnn_forward.1} parent=1 // pred_check
      _
    $region39: #{cnn_forward.1} parent=1 // pred_check_branch
      %581 = sbr.rel (0) target = $region41
    $region40: #{cnn_forward.1} parent=1 // pred_region
      %582 = dma.done [#allocation3], 32
    $region41: #{cnn_forward.1} parent=1 // pred_fallthru
      _
    // Predicated region
    $region42: #{cnn_forward.1} parent=1 // pred_check
      _
    $region43: #{cnn_forward.1} parent=1 // pred_check_branch
      %584 = sbr.rel (0) target = $region45
    $region44: #{cnn_forward.1} parent=1 // pred_region
      %585 = dma.done [#allocation5], 32
    $region45: #{cnn_forward.1} parent=1 // pred_fallthru
      _
    %586 = vsyncpa [#allocation3], 1
    %587 = vsyncpa [#allocation5], 1

</llo_original>
